<compile_context>
chip_gen: v7x
topology: tpu7x:2x2x1
jax: 0.10.0
libtpu: 0.0.40
codegen_flags: <defaults>
</compile_context>

<pallas_src>
import functools

import jax
import jax.numpy as jnp
from jax.experimental import pallas as pl
from jax.experimental.pallas import tpu as pltpu

HIDDEN = 24
LANE = 128      # lane width of a vreg (last dim)
SUBLANE = 8     # f32 sublane tile (second-to-last dim)
NO_GRID_MAX_ROWS = 1024   # whole-batch-VMEM-resident (no grid) path cap


def _round_up(n, m):
    return ((n + m - 1) // m) * m


def _default_batch_tile():
    """Pick a batch tile from the chip's VMEM (v5e/v6e: 128 MiB -> 8192 rows, v7x: 64 MiB -> 4096)."""
    try:
        vmem_bytes = pltpu.get_tpu_info().vmem_capacity_bytes
    except Exception:
        vmem_bytes = 64 << 20   # assume the smaller (v7x) budget
    return 8192 if vmem_bytes >= (96 << 20) else 4096


def net_kernel(x_ref, w1_ref, b1_ref, w2_ref, b2_ref, w3_ref, b3_ref, out_ref):
    # fc1: K = num_state (tiny, e.g. 4). Kept f32 -- MXU cost is negligible and
    # x arrives with its true (unpadded) feature dim.
    h1 = jnp.tanh(
        jnp.dot(x_ref[...], w1_ref[...], preferred_element_type=jnp.float32)
        + b1_ref[...]
    )
    # fc2 / out: bf16 operands on the MXU, f32 accumulation, f32 bias + tanh (EUP).
    h2 = jnp.tanh(
        jnp.dot(h1.astype(jnp.bfloat16), w2_ref[...],
                preferred_element_type=jnp.float32)
        + b2_ref[...]
    )
    out_ref[...] = (
        jnp.dot(h2.astype(jnp.bfloat16), w3_ref[...],
                preferred_element_type=jnp.float32)
        + b3_ref[...]
    )


def prepare_params(params):
    """Pad/cast weights ONCE (call at init or whenever params update, not per forward).

    Accepts PyTorch-style weights laid out [in, out] and biases either 1-D (out,)
    or (1, out). Only output feature dims are padded to 128 lanes; fc1's input
    dim stays at its true size so the kernel's first dot runs with K=num_state.
    """
    w1 = jnp.asarray(params["w1"], jnp.float32)
    w2 = jnp.asarray(params["w2"], jnp.float32)
    w3 = jnp.asarray(params["w3"], jnp.float32)
    b1 = jnp.asarray(params["b1"], jnp.float32).reshape(1, -1)
    b2 = jnp.asarray(params["b2"], jnp.float32).reshape(1, -1)
    b3 = jnp.asarray(params["b3"], jnp.float32).reshape(1, -1)

    num_state, hidden = w1.shape
    num_action = w3.shape[1]
    h_p = _round_up(hidden, LANE)
    a_p = _round_up(num_action, LANE)

    w1_p = jnp.zeros((num_state, h_p), jnp.float32).at[:, :hidden].set(w1)
    b1_p = jnp.zeros((1, h_p), jnp.float32).at[:, :hidden].set(b1)
    w2_p = (jnp.zeros((h_p, h_p), jnp.bfloat16)
            .at[:hidden, :hidden].set(w2.astype(jnp.bfloat16)))
    b2_p = jnp.zeros((1, h_p), jnp.float32).at[:, :hidden].set(b2)
    w3_p = (jnp.zeros((h_p, a_p), jnp.bfloat16)
            .at[:hidden, :num_action].set(w3.astype(jnp.bfloat16)))
    b3_p = jnp.zeros((1, a_p), jnp.float32).at[:, :num_action].set(b3)

    return {
        "w1": w1_p, "b1": b1_p, "w2": w2_p, "b2": b2_p, "w3": w3_p, "b3": b3_p,
        "num_state": int(num_state), "num_action": int(num_action),
        "h_p": int(h_p), "a_p": int(a_p),
    }


def net_forward(x, prepped, *, batch_tile=None):
    """x: [B, num_state] float32. prepped: output of prepare_params()."""
    B, num_state = x.shape
    assert num_state == prepped["num_state"], (num_state, prepped["num_state"])
    num_action = prepped["num_action"]
    h_p, a_p = prepped["h_p"], prepped["a_p"]
    w1, b1, w2, b2, w3, b3 = (prepped[k] for k in ("w1", "b1", "w2", "b2", "w3", "b3"))

    if batch_tile is None:
        batch_tile = _default_batch_tile()

    if B <= NO_GRID_MAX_ROWS:
        # --- Small batch (action selection / small replay): single shot, no grid,
        #     everything VMEM-resident, no per-step pipeline bookkeeping. ---
        b_p = _round_up(B, SUBLANE)
        x_p = x if b_p == B else jnp.zeros((b_p, num_state), x.dtype).at[:B].set(x)
        vmem = pl.BlockSpec(memory_space=pltpu.MemorySpace.VMEM)
        out_p = pl.pallas_call(
            net_kernel,
            out_shape=jax.ShapeDtypeStruct((b_p, a_p), jnp.float32),
            in_specs=[vmem] * 7,
            out_specs=vmem,
        )(x_p, w1, b1, w2, b2, w3, b3)
    else:
        # --- Large batch: block over batch with big VMEM-sized tiles; keep >= 4
        #     grid steps so double-buffered x/out DMAs overlap compute (and each
        #     v7x TensorCore gets >= 2 steps under "parallel" sharding). ---
        tb = max(SUBLANE, _round_up(min(batch_tile, pl.cdiv(B, 4)), SUBLANE))
        nb = pl.cdiv(B, tb)
        b_p = nb * tb
        x_p = x if b_p == B else jnp.zeros((b_p, num_state), x.dtype).at[:B].set(x)

        # Per-step VMEM: x + out double-buffered, resident weights (~0.1 MiB),
        # f32/bf16 activation temporaries. Raise the scoped limit accordingly
        # (v5e default is only 16 MiB; keep below v7x's 64 MiB physical).
        vmem_est = tb * (num_state * 8 + a_p * 8 + h_p * 16) + (2 << 20)
        vmem_limit = int(min(max(32 << 20, 2 * vmem_est), 56 << 20))

        out_p = pl.pallas_call(
            net_kernel,
            out_shape=jax.ShapeDtypeStruct((b_p, a_p), jnp.float32),
            grid=(nb,),
            in_specs=[
                pl.BlockSpec((tb, num_state), lambda i: (i, 0)),   # x: true K, no lane pad
                pl.BlockSpec((num_state, h_p), lambda i: (0, 0)),  # weights/biases resident
                pl.BlockSpec((1, h_p), lambda i: (0, 0)),
                pl.BlockSpec((h_p, h_p), lambda i: (0, 0)),
                pl.BlockSpec((1, h_p), lambda i: (0, 0)),
                pl.BlockSpec((h_p, a_p), lambda i: (0, 0)),
                pl.BlockSpec((1, a_p), lambda i: (0, 0)),
            ],
            out_specs=pl.BlockSpec((tb, a_p), lambda i: (i, 0)),
            compiler_params=pltpu.CompilerParams(
                dimension_semantics=("parallel",),
                vmem_limit_bytes=vmem_limit,
            ),
        )(x_p, w1, b1, w2, b2, w3, b3)

    # TODO(synk): for DQN greedy-action / Q(s,a)-gather consumers, fuse the
    # argmax/gather into the kernel epilogue so this padded slice (and its HBM
    # round trip) disappears while keeping the lane-dense unmasked store.
    return out_p[:B, :num_action]


def init_params(key, num_state, num_action):
    """PyTorch-Linear-style init: U(-1/sqrt(fan_in), 1/sqrt(fan_in)); 1-D biases like torch."""
    ks = jax.random.split(key, 6)

    def linear(kw, kb, fan_in, fan_out):
        bound = 1.0 / jnp.sqrt(jnp.float32(fan_in))
        w = jax.random.uniform(kw, (fan_in, fan_out), jnp.float32, -bound, bound)
        b = jax.random.uniform(kb, (fan_out,), jnp.float32, -bound, bound)
        return w, b

    w1, b1 = linear(ks[0], ks[1], num_state, HIDDEN)
    w2, b2 = linear(ks[2], ks[3], HIDDEN, HIDDEN)
    w3, b3 = linear(ks[4], ks[5], HIDDEN, num_action)
    return {"w1": w1, "b1": b1, "w2": w2, "b2": b2, "w3": w3, "b3": b3}


def net_ref(x, p):
    """Pure f32 reference (module semantics)."""
    dot = functools.partial(jnp.dot, precision=jax.lax.Precision.HIGHEST)
    h1 = jnp.tanh(dot(x, p["w1"]) + p["b1"])
    h2 = jnp.tanh(dot(h1, p["w2"]) + p["b2"])
    return dot(h2, p["w3"]) + p["b3"]


if __name__ == "__main__":
    key = jax.random.PRNGKey(0)
    k_param, k_x1, k_x2 = jax.random.split(key, 3)

    # CartPole-like shapes: state=4, actions=2.
    num_state, num_action = 4, 2
    params = init_params(k_param, num_state, num_action)
    prepped = prepare_params(params)   # hoisted out of the per-call hot path

    # Small-batch action-selection path (no grid, fully VMEM-resident).
    batch = 2
    x_small = jax.random.normal(k_x1, (batch, num_state), jnp.float32)
    out_small = jax.block_until_ready(net_forward(x_small, prepped))
    ref_small = net_ref(x_small, params)
    assert out_small.shape == (batch, num_action)
    # bf16 MXU operands on fc2/out -> loosened tolerance vs the f32 reference.
    assert jnp.allclose(out_small, ref_small, atol=3e-2, rtol=3e-2), (out_small, ref_small)

    # Replay-batch path (grid over batch, resident weights, "parallel", >=4 steps).
    big_batch = 4096
    x_big = jax.random.normal(k_x2, (big_batch, num_state), jnp.float32)
    out_big = jax.block_until_ready(net_forward(x_big, prepped, batch_tile=512))
    ref_big = net_ref(x_big, params)
    assert out_big.shape == (big_batch, num_action)
    assert jnp.allclose(out_big, ref_big, atol=3e-2, rtol=3e-2)

    print("KERNEL_OK")
</pallas_src>

<mosaic_0001>
module attributes {stable_mosaic.version = 11 : i64} {
  func.func @net_kernel(%arg0: memref<8x4xf32, #tpu.memory_space<vmem>>, %arg1: memref<4x128xf32, #tpu.memory_space<vmem>>, %arg2: memref<1x128xf32, #tpu.memory_space<vmem>>, %arg3: memref<128x128xbf16, #tpu.memory_space<vmem>>, %arg4: memref<1x128xf32, #tpu.memory_space<vmem>>, %arg5: memref<128x128xbf16, #tpu.memory_space<vmem>>, %arg6: memref<1x128xf32, #tpu.memory_space<vmem>>, %arg7: memref<8x128xf32, #tpu.memory_space<vmem>>) attributes {dimension_semantics = [], scalar_prefetch = 0 : i64, scratch_operands = 0 : i64, tpu.core_type = #tpu.core_type<tc>} {
    %c0 = arith.constant 0 : index
    %c0_0 = arith.constant 0 : index
    %0 = vector.load %arg0[%c0, %c0_0] : memref<8x4xf32, #tpu.memory_space<vmem>>, vector<8x4xf32>
    %c0_1 = arith.constant 0 : index
    %c0_2 = arith.constant 0 : index
    %1 = vector.load %arg1[%c0_1, %c0_2] : memref<4x128xf32, #tpu.memory_space<vmem>>, vector<4x128xf32>
    %cst = arith.constant dense<0.000000e+00> : vector<8x128xf32>
    %2 = tpu.matmul %0, %1, %cst {dimension_numbers = #tpu.dot_dimension_numbers<[1], [0], [0], [1], [0, 0, 1, 1], [], []>} : vector<8x4xf32>, vector<4x128xf32>, vector<8x128xf32> -> vector<8x128xf32>
    %c0_3 = arith.constant 0 : index
    %c0_4 = arith.constant 0 : index
    %3 = vector.load %arg2[%c0_3, %c0_4] : memref<1x128xf32, #tpu.memory_space<vmem>>, vector<1x128xf32>
    %4 = vector.broadcast %3 : vector<1x128xf32> to vector<8x128xf32>
    %5 = arith.addf %2, %4 : vector<8x128xf32>
    %6 = math.tanh %5 : vector<8x128xf32>
    %7 = arith.truncf %6 : vector<8x128xf32> to vector<8x128xbf16>
    %c0_5 = arith.constant 0 : index
    %c0_6 = arith.constant 0 : index
    %8 = vector.load %arg3[%c0_5, %c0_6] : memref<128x128xbf16, #tpu.memory_space<vmem>>, vector<128x128xbf16>
    %cst_7 = arith.constant dense<0.000000e+00> : vector<8x128xf32>
    %9 = tpu.matmul %7, %8, %cst_7 {dimension_numbers = #tpu.dot_dimension_numbers<[1], [0], [0], [1], [0, 0, 1, 1], [], []>} : vector<8x128xbf16>, vector<128x128xbf16>, vector<8x128xf32> -> vector<8x128xf32>
    %c0_8 = arith.constant 0 : index
    %c0_9 = arith.constant 0 : index
    %10 = vector.load %arg4[%c0_8, %c0_9] : memref<1x128xf32, #tpu.memory_space<vmem>>, vector<1x128xf32>
    %11 = vector.broadcast %10 : vector<1x128xf32> to vector<8x128xf32>
    %12 = arith.addf %9, %11 : vector<8x128xf32>
    %13 = math.tanh %12 : vector<8x128xf32>
    %14 = arith.truncf %13 : vector<8x128xf32> to vector<8x128xbf16>
    %c0_10 = arith.constant 0 : index
    %c0_11 = arith.constant 0 : index
    %15 = vector.load %arg5[%c0_10, %c0_11] : memref<128x128xbf16, #tpu.memory_space<vmem>>, vector<128x128xbf16>
    %cst_12 = arith.constant dense<0.000000e+00> : vector<8x128xf32>
    %16 = tpu.matmul %14, %15, %cst_12 {dimension_numbers = #tpu.dot_dimension_numbers<[1], [0], [0], [1], [0, 0, 1, 1], [], []>} : vector<8x128xbf16>, vector<128x128xbf16>, vector<8x128xf32> -> vector<8x128xf32>
    %c0_13 = arith.constant 0 : index
    %c0_14 = arith.constant 0 : index
    %17 = vector.load %arg6[%c0_13, %c0_14] : memref<1x128xf32, #tpu.memory_space<vmem>>, vector<1x128xf32>
    %18 = vector.broadcast %17 : vector<1x128xf32> to vector<8x128xf32>
    %19 = arith.addf %16, %18 : vector<8x128xf32>
    %c0_15 = arith.constant 0 : index
    %c0_16 = arith.constant 0 : index
    %20 = vector.load %arg7[%c0_15, %c0_16] : memref<8x128xf32, #tpu.memory_space<vmem>>, vector<8x128xf32>
    tpu.vector_store %arg7[%c0_15, %c0_16], %19 {strides = array<i32>} : memref<8x128xf32, #tpu.memory_space<vmem>>, vector<8x128xf32>,
    return
  }
}

</mosaic_0001>

<llo_original>
// kernel: tpu_custom_call.1
$region0: #{tpu_custom_call.1}
  #allocation0 [shape = 'u32[]', space=smem, size = 0x4, offset = 0x4, fixed_abs, tag = 'smem constant byte address 0x4 - core index']
  #allocation1 [shape = 'u32[144,128]{1,0:T(1,128)}', space=vmem, size = 0x12000, scoped, tag = 'internal scratch']
  %s0 = inlined_call_operand.vmem [shape: f32[8,4], index: 0, kind: input, shape index: {}]
  %s1 = inlined_call_operand.vmem [shape: f32[4,128], index: 1, kind: input, shape index: {}]
  %s2 = inlined_call_operand.vmem [shape: f32[1,128], index: 2, kind: input, shape index: {}]
  %s3 = inlined_call_operand.hbm [shape: bf16[128,128], index: 3, kind: input, shape index: {}]
  %s4 = inlined_call_operand.vmem [shape: f32[1,128], index: 4, kind: input, shape index: {}]
  %s5 = inlined_call_operand.hbm [shape: bf16[128,128], index: 5, kind: input, shape index: {}]
  %s6 = inlined_call_operand.vmem [shape: f32[1,128], index: 6, kind: input, shape index: {}]
  %s7 = inlined_call_operand.hbm [shape: f32[8,128], index: 7, kind: output, shape index: {}]
  %s8 = sld [smem:[#allocation0]]
  $region46: #{tpu_custom_call.1} parent=0
    _
  %s10 = ssub.s32 1, %s8
  %s11 = scalar_select 0, %s10, %s8
  $region1: #{tpu_custom_call.1} parent=0
    #allocation2 [shape = 'u8[32768]{0}', space=vmem, size = 0x8000, scoped, tag = 'input window, operand 3, single buffered']
    #allocation3 [shape = 's32[1]{0}', space=sflag, size = 0x4, scoped, tag = 'scoped memory for tpu_custom_call.1']
    #allocation4 [shape = 's32[1]{0}', space=sflag, size = 0x4, scoped, tag = 'scoped memory for tpu_custom_call.1']
    #allocation5 [shape = 'u8[32768]{0}', space=vmem, size = 0x8000, scoped, tag = 'input window, operand 5, single buffered']
    #allocation6 [shape = 's32[1]{0}', space=sflag, size = 0x4, scoped, tag = 'scoped memory for tpu_custom_call.1']
    #allocation7 [shape = 'u8[4096]{0}', space=vmem, size = 0x1000, scoped, tag = 'output window, operand 0, single buffered']
    %12 = vsyncpa [#allocation3], 0
    %13 = vsyncpa [#allocation6], 0
    %14 = vsyncpa [#allocation4], 0
    // Predicated region
    $region2: #{tpu_custom_call.1} parent=1 // pred_check
      _
    $region3: #{tpu_custom_call.1} parent=1 // pred_check_branch
      %16 = sbr.rel (0) target = $region5
    $region4: #{tpu_custom_call.1} parent=1 // pred_region
      _
    $region5: #{tpu_custom_call.1} parent=1 // pred_fallthru
      _
    // Predicated region
    $region6: #{tpu_custom_call.1} parent=1 // pred_check
      _
    $region7: #{tpu_custom_call.1} parent=1 // pred_check_branch
      %18 = sbr.rel (0) target = $region9
    $region8: #{tpu_custom_call.1} parent=1 // pred_region
      _
    $region9: #{tpu_custom_call.1} parent=1 // pred_fallthru
      _
    // Predicated region
    $region10: #{tpu_custom_call.1} parent=1 // pred_check
      _
    $region11: #{tpu_custom_call.1} parent=1 // pred_check_branch
      %20 = sbr.rel (0) target = $region13
    $region12: #{tpu_custom_call.1} parent=1 // pred_region
      _
    $region13: #{tpu_custom_call.1} parent=1 // pred_fallthru
      _
    // Predicated region
    $region14: #{tpu_custom_call.1} parent=1 // pred_check
      _
    $region15: #{tpu_custom_call.1} parent=1 // pred_check_branch
      %22 = sbr.rel (0) target = $region17
    $region16: #{tpu_custom_call.1} parent=1 // pred_region
      %s24 = ssub.s32 1024, 1024
      %25 = vsyncadd [#allocation3], %s24
      %s26 = sshll.u32 [#allocation2], 4
      %s27 = int_to_ptr.vmem [resolvable:$true] %s26
      %32 = dma.hbm_to_vmem [thread:$0]  %s3, 1024, %s27, [#allocation3], 64, 64, 4
    $region17: #{tpu_custom_call.1} parent=1 // pred_fallthru
      _
    // Predicated region
    $region18: #{tpu_custom_call.1} parent=1 // pred_check
      _
    $region19: #{tpu_custom_call.1} parent=1 // pred_check_branch
      %34 = sbr.rel (0) target = $region21
    $region20: #{tpu_custom_call.1} parent=1 // pred_region
      _
    $region21: #{tpu_custom_call.1} parent=1 // pred_fallthru
      _
    // Predicated region
    $region22: #{tpu_custom_call.1} parent=1 // pred_check
      _
    $region23: #{tpu_custom_call.1} parent=1 // pred_check_branch
      %36 = sbr.rel (0) target = $region25
    $region24: #{tpu_custom_call.1} parent=1 // pred_region
      %s38 = ssub.s32 1024, 1024
      %39 = vsyncadd [#allocation6], %s38
      %s40 = sshll.u32 [#allocation5], 4
      %s41 = int_to_ptr.vmem [resolvable:$true] %s40
      %46 = dma.hbm_to_vmem [thread:$0]  %s5, 1024, %s41, [#allocation6], 64, 64, 4
    $region25: #{tpu_custom_call.1} parent=1 // pred_fallthru
      _
    // Predicated region
    $region26: #{tpu_custom_call.1} parent=1 // pred_check
      _
    $region27: #{tpu_custom_call.1} parent=1 // pred_check_branch
      %48 = sbr.rel (0) target = $region29
    $region28: #{tpu_custom_call.1} parent=1 // pred_region
      _
    $region29: #{tpu_custom_call.1} parent=1 // pred_fallthru
      _
    // Predicated region
    $region30: #{tpu_custom_call.1} parent=1 // pred_check
      _
    $region31: #{tpu_custom_call.1} parent=1 // pred_check_branch
      %50 = sbr.rel (0) target = $region33
    $region32: #{tpu_custom_call.1} parent=1 // pred_region
      %51 = dma.done [#allocation3], 1024
    $region33: #{tpu_custom_call.1} parent=1 // pred_fallthru
      _
    // Predicated region
    $region34: #{tpu_custom_call.1} parent=1 // pred_check
      _
    $region35: #{tpu_custom_call.1} parent=1 // pred_check_branch
      %53 = sbr.rel (0) target = $region37
    $region36: #{tpu_custom_call.1} parent=1 // pred_region
      %54 = dma.done [#allocation6], 1024
    $region37: #{tpu_custom_call.1} parent=1 // pred_fallthru
      _
    %v56 = vld [vmem:[%s0] sm:$0xff]
    %v57 = vld [vmem:[%s1] sm:$0xf]
    %v58 = vld [vmem:[%s2] sm:$0x1]
    %v60 = vlaneseq
    %v61 = vshrl.u32 %v60, 7
    %v62 = vsub.s32 0, %v61
    %v63 = vrot.slane %v58, %v62
    %vm65 = vcmask 31744
    %v67 = vsel %vm65, %v56, 0
    %vm69 = vcmask 1043456
    %v71 = vsel %vm69, %v57, 0
    %73 = vmatprep.subr.mxu0 0.0
    %74 = vmatpush1.msra.mxu0 %v71
    %75 = vmatprep.subr.mxu0 0.0
    %76 = vmatpush1.msra.mxu0 0.0
    %77 = vmatprep.subr.mxu0 0.0
    %78 = vmatpush1.msra.mxu0 0.0
    %79 = vmatprep.subr.mxu0 0.0
    %80 = vmatpush1.msra.mxu0 0.0
    %81 = vmatprep.subr.mxu0 0.0
    %82 = vmatpush1.msra.mxu0 0.0
    %83 = vmatprep.subr.mxu0 0.0
    %84 = vmatpush1.msra.mxu0 0.0
    %85 = vmatprep.subr.mxu0 0.0
    %86 = vmatpush1.msra.mxu0 0.0
    %87 = vmatprep.subr.mxu0 0.0
    %88 = vmatpush1.msra.mxu0 0.0
    %89 = vmatprep.subr.mxu0 0.0
    %90 = vmatpush1.msra.mxu0 0.0
    %91 = vmatprep.subr.mxu0 0.0
    %92 = vmatpush1.msra.mxu0 0.0
    %93 = vmatprep.subr.mxu0 0.0
    %94 = vmatpush1.msra.mxu0 0.0
    %95 = vmatprep.subr.mxu0 0.0
    %96 = vmatpush1.msra.mxu0 0.0
    %97 = vmatprep.subr.mxu0 0.0
    %98 = vmatpush1.msra.mxu0 0.0
    %99 = vmatprep.subr.mxu0 0.0
    %100 = vmatpush1.msra.mxu0 0.0
    %101 = vmatprep.subr.mxu0 0.0
    %102 = vmatpush1.msra.mxu0 0.0
    %103 = vmatprep.subr.mxu0 0.0
    %104 = vmatpush1.msra.mxu0 0.0
    %105 = vmatprep.subr.mxu0 0.0
    %106 = vmatpush1.msra.mxu0 0.0
    %107 = vmatprep.subr.mxu0 0.0
    %108 = vmatpush1.msra.mxu0 0.0
    %109 = vmatprep.subr.mxu0 0.0
    %110 = vmatpush1.msra.mxu0 0.0
    %111 = vmatprep.subr.mxu0 0.0
    %112 = vmatpush1.msra.mxu0 0.0
    %113 = vmatprep.subr.mxu0 0.0
    %114 = vmatpush1.msra.mxu0 0.0
    %115 = vmatprep.subr.mxu0 0.0
    %116 = vmatpush1.msra.mxu0 0.0
    %117 = vmatprep.subr.mxu0 0.0
    %118 = vmatpush1.msra.mxu0 0.0
    %119 = vmatprep.subr.mxu0 0.0
    %120 = vmatpush1.msra.mxu0 0.0
    %121 = vmatprep.subr.mxu0 0.0
    %122 = vmatpush1.msra.mxu0 0.0
    %123 = vmatprep.subr.mxu0 0.0
    %124 = vmatpush1.msra.mxu0 0.0
    %125 = vmatprep.subr.mxu0 0.0
    %126 = vmatpush1.msra.mxu0 0.0
    %127 = vmatprep.subr.mxu0 0.0
    %128 = vmatpush1.msra.mxu0 0.0
    %129 = vmatprep.subr.mxu0 0.0
    %130 = vmatpush1.msra.mxu0 0.0
    %131 = vmatprep.subr.mxu0 0.0
    %132 = vmatpush1.msra.mxu0 0.0
    %133 = vmatprep.subr.mxu0 0.0
    %134 = vmatpush1.msra.mxu0 0.0
    %135 = vmatprep.subr.mxu0 0.0
    %136 = vmatpush1.msra.mxu0 0.0
    %137 = vmatprep.mubr.f32.mxu0 0.0
    %138 = vmatmul.mubr.f32.gmra.mrb[0].mxu0 %v67
    %v139 = vpop.f32.mrb[0].mxu0
    %v140 = vadd.f32 %v63, %v139
    %v141 = vpop.f32.mrb[0].mxu0
    %142 = vdwg.mxu0
    %v143 = vtanh.pop %v140
    %v144 = vpack.c.bf16 %v143, %v143
    %v145 = vld [vmem:[#allocation2] sm:$0xf]
    %v146 = vld [vmem:[#allocation2 + $0x4] sm:$0xf]
    %v147 = vld [vmem:[#allocation2 + $0x8] sm:$0xf]
    %v148 = vld [vmem:[#allocation2 + $0xc] sm:$0xf]
    %v149 = vld [vmem:[#allocation2 + $0x10] sm:$0xf]
    %v150 = vld [vmem:[#allocation2 + $0x14] sm:$0xf]
    %v151 = vld [vmem:[#allocation2 + $0x18] sm:$0xf]
    %v152 = vld [vmem:[#allocation2 + $0x1c] sm:$0xf]
    %v153 = vld [vmem:[#allocation2 + $0x20] sm:$0xf]
    %v154 = vld [vmem:[#allocation2 + $0x24] sm:$0xf]
    %v155 = vld [vmem:[#allocation2 + $0x28] sm:$0xf]
    %v156 = vld [vmem:[#allocation2 + $0x2c] sm:$0xf]
    %v157 = vld [vmem:[#allocation2 + $0x30] sm:$0xf]
    %v158 = vld [vmem:[#allocation2 + $0x34] sm:$0xf]
    %v159 = vld [vmem:[#allocation2 + $0x38] sm:$0xf]
    %v160 = vld [vmem:[#allocation2 + $0x3c] sm:$0xf]
    %v161 = vld [vmem:[%s4] sm:$0x1]
    %v163 = vlaneseq
    %v164 = vshrl.u32 %v163, 7
    %v165 = vsub.s32 0, %v164
    %v166 = vrot.slane %v161, %v165
    %v184 = vunpack.c.l.b16 %v145
    %v185 = vunpack.c.l.b16 %v146
    %v186 = vunpack.c.l.b16 %v147
    %v187 = vunpack.c.l.b16 %v148
    %v188 = vunpack.c.l.b16 %v149
    %v189 = vunpack.c.l.b16 %v150
    %v190 = vunpack.c.l.b16 %v151
    %v191 = vunpack.c.l.b16 %v152
    %v192 = vunpack.c.l.b16 %v153
    %v193 = vunpack.c.l.b16 %v154
    %v194 = vunpack.c.l.b16 %v155
    %v195 = vunpack.c.l.b16 %v156
    %v196 = vunpack.c.l.b16 %v157
    %v197 = vunpack.c.l.b16 %v158
    %v198 = vunpack.c.l.b16 %v159
    %v199 = vunpack.c.l.b16 %v160
    %v200 = vpack.c.b16 %v185, %v184
    %v201 = vpack.c.b16 %v187, %v186
    %v202 = vpack.c.b16 %v189, %v188
    %v203 = vpack.c.b16 %v191, %v190
    %v204 = vpack.c.b16 %v193, %v192
    %v205 = vpack.c.b16 %v195, %v194
    %v206 = vpack.c.b16 %v197, %v196
    %v207 = vpack.c.b16 %v199, %v198
    %216 = vmatprep.subr.bf16.mxu0 0
    %217 = vmatpush1.bf16.msra.mxu0 %v200
    %218 = vmatprep.subr.bf16.mxu0 0
    %219 = vmatpush1.bf16.msra.mxu0 %v201
    %220 = vmatprep.subr.bf16.mxu0 0
    %221 = vmatpush1.bf16.msra.mxu0 %v202
    %222 = vmatprep.subr.bf16.mxu0 0
    %223 = vmatpush1.bf16.msra.mxu0 %v203
    %224 = vmatprep.subr.bf16.mxu0 0
    %225 = vmatpush1.bf16.msra.mxu0 %v204
    %226 = vmatprep.subr.bf16.mxu0 0
    %227 = vmatpush1.bf16.msra.mxu0 %v205
    %228 = vmatprep.subr.bf16.mxu0 0
    %229 = vmatpush1.bf16.msra.mxu0 %v206
    %230 = vmatprep.subr.bf16.mxu0 0
    %231 = vmatpush1.bf16.msra.mxu0 %v207
    %232 = vmatprep.subr.bf16.mxu0 0
    %233 = vmatpush1.bf16.msra.mxu0 0
    %234 = vmatprep.subr.bf16.mxu0 0
    %235 = vmatpush1.bf16.msra.mxu0 0
    %236 = vmatprep.subr.bf16.mxu0 0
    %237 = vmatpush1.bf16.msra.mxu0 0
    %238 = vmatprep.subr.bf16.mxu0 0
    %239 = vmatpush1.bf16.msra.mxu0 0
    %240 = vmatprep.subr.bf16.mxu0 0
    %241 = vmatpush1.bf16.msra.mxu0 0
    %242 = vmatprep.subr.bf16.mxu0 0
    %243 = vmatpush1.bf16.msra.mxu0 0
    %244 = vmatprep.subr.bf16.mxu0 0
    %245 = vmatpush1.bf16.msra.mxu0 0
    %246 = vmatprep.subr.bf16.mxu0 0
    %247 = vmatpush1.bf16.msra.mxu0 0
    %248 = vmatprep.mubr.bf16.mxu0 0
    %249 = vmatmul.mubr.bf16.gmra.mrb[0].mxu0 %v144
    %v250 = vpop.f32.mrb[0].mxu0
    %v251 = vadd.f32 %v166, %v250
    %v252 = vpop.f32.mrb[0].mxu0
    %v253 = vpop.f32.mrb[0].mxu0
    %v254 = vpop.f32.mrb[0].mxu0
    %255 = vdwg.mxu0
    %v256 = vtanh.pop %v251
    %v257 = vpack.c.bf16 %v256, %v256
    %v258 = vld [vmem:[#allocation5] sm:$0xf]
    %v259 = vld [vmem:[#allocation5 + $0x4] sm:$0xf]
    %v260 = vld [vmem:[#allocation5 + $0x8] sm:$0xf]
    %v261 = vld [vmem:[#allocation5 + $0xc] sm:$0xf]
    %v262 = vld [vmem:[#allocation5 + $0x10] sm:$0xf]
    %v263 = vld [vmem:[#allocation5 + $0x14] sm:$0xf]
    %v264 = vld [vmem:[#allocation5 + $0x18] sm:$0xf]
    %v265 = vld [vmem:[#allocation5 + $0x1c] sm:$0xf]
    %v266 = vld [vmem:[#allocation5 + $0x20] sm:$0xf]
    %v267 = vld [vmem:[#allocation5 + $0x24] sm:$0xf]
    %v268 = vld [vmem:[#allocation5 + $0x28] sm:$0xf]
    %v269 = vld [vmem:[#allocation5 + $0x2c] sm:$0xf]
    %v270 = vld [vmem:[#allocation5 + $0x30] sm:$0xf]
    %v271 = vld [vmem:[#allocation5 + $0x34] sm:$0xf]
    %v272 = vld [vmem:[#allocation5 + $0x38] sm:$0xf]
    %v273 = vld [vmem:[#allocation5 + $0x3c] sm:$0xf]
    %v274 = vld [vmem:[%s6] sm:$0x1]
    %v276 = vlaneseq
    %v277 = vshrl.u32 %v276, 7
    %v278 = vsub.s32 0, %v277
    %v279 = vrot.slane %v274, %v278
    %v297 = vunpack.c.l.b16 %v258
    %v298 = vunpack.c.l.b16 %v259
    %v299 = vunpack.c.l.b16 %v260
    %v300 = vunpack.c.l.b16 %v261
    %v301 = vunpack.c.l.b16 %v262
    %v302 = vunpack.c.l.b16 %v263
    %v303 = vunpack.c.l.b16 %v264
    %v304 = vunpack.c.l.b16 %v265
    %v305 = vunpack.c.l.b16 %v266
    %v306 = vunpack.c.l.b16 %v267
    %v307 = vunpack.c.l.b16 %v268
    %v308 = vunpack.c.l.b16 %v269
    %v309 = vunpack.c.l.b16 %v270
    %v310 = vunpack.c.l.b16 %v271
    %v311 = vunpack.c.l.b16 %v272
    %v312 = vunpack.c.l.b16 %v273
    %v313 = vpack.c.b16 %v298, %v297
    %v314 = vpack.c.b16 %v300, %v299
    %v315 = vpack.c.b16 %v302, %v301
    %v316 = vpack.c.b16 %v304, %v303
    %v317 = vpack.c.b16 %v306, %v305
    %v318 = vpack.c.b16 %v308, %v307
    %v319 = vpack.c.b16 %v310, %v309
    %v320 = vpack.c.b16 %v312, %v311
    %329 = vmatprep.subr.bf16.mxu0 0
    %330 = vmatpush1.bf16.msra.mxu0 %v313
    %331 = vmatprep.subr.bf16.mxu0 0
    %332 = vmatpush1.bf16.msra.mxu0 %v314
    %333 = vmatprep.subr.bf16.mxu0 0
    %334 = vmatpush1.bf16.msra.mxu0 %v315
    %335 = vmatprep.subr.bf16.mxu0 0
    %336 = vmatpush1.bf16.msra.mxu0 %v316
    %337 = vmatprep.subr.bf16.mxu0 0
    %338 = vmatpush1.bf16.msra.mxu0 %v317
    %339 = vmatprep.subr.bf16.mxu0 0
    %340 = vmatpush1.bf16.msra.mxu0 %v318
    %341 = vmatprep.subr.bf16.mxu0 0
    %342 = vmatpush1.bf16.msra.mxu0 %v319
    %343 = vmatprep.subr.bf16.mxu0 0
    %344 = vmatpush1.bf16.msra.mxu0 %v320
    %345 = vmatprep.subr.bf16.mxu0 0
    %346 = vmatpush1.bf16.msra.mxu0 0
    %347 = vmatprep.subr.bf16.mxu0 0
    %348 = vmatpush1.bf16.msra.mxu0 0
    %349 = vmatprep.subr.bf16.mxu0 0
    %350 = vmatpush1.bf16.msra.mxu0 0
    %351 = vmatprep.subr.bf16.mxu0 0
    %352 = vmatpush1.bf16.msra.mxu0 0
    %353 = vmatprep.subr.bf16.mxu0 0
    %354 = vmatpush1.bf16.msra.mxu0 0
    %355 = vmatprep.subr.bf16.mxu0 0
    %356 = vmatpush1.bf16.msra.mxu0 0
    %357 = vmatprep.subr.bf16.mxu0 0
    %358 = vmatpush1.bf16.msra.mxu0 0
    %359 = vmatprep.subr.bf16.mxu0 0
    %360 = vmatpush1.bf16.msra.mxu0 0
    %361 = vmatprep.mubr.bf16.mxu0 0
    %362 = vmatmul.mubr.bf16.gmra.mrb[0].mxu0 %v257
    %v363 = vpop.f32.mrb[0].mxu0
    %v364 = vadd.f32 %v279, %v363
    %v365 = vpop.f32.mrb[0].mxu0
    %v366 = vpop.f32.mrb[0].mxu0
    %v367 = vpop.f32.mrb[0].mxu0
    %368 = vdwg.mxu0
    %369 = vst [vmem:[#allocation7] sm:$0xff] %v364
    // Predicated region
    $region38: #{tpu_custom_call.1} parent=1 // pred_check
      _
    $region39: #{tpu_custom_call.1} parent=1 // pred_check_branch
      %371 = sbr.rel (0) target = $region41
    $region40: #{tpu_custom_call.1} parent=1 // pred_region
      %s373 = ssub.s32 128, 128
      %374 = vsyncadd [#allocation4], %s373
      %s376 = sshll.u32 [#allocation7], 4
      %s377 = int_to_ptr.vmem [resolvable:$true] %s376
      %379 = dma.vmem_to_hbm [thread:$0]  %s377, 128, %s7, [#allocation4]
    $region41: #{tpu_custom_call.1} parent=1 // pred_fallthru
      _
    // Predicated region
    $region42: #{tpu_custom_call.1} parent=1 // pred_check
      _
    $region43: #{tpu_custom_call.1} parent=1 // pred_check_branch
      %381 = sbr.rel (0) target = $region45
    $region44: #{tpu_custom_call.1} parent=1 // pred_region
      %382 = dma.done [#allocation4], 128
    $region45: #{tpu_custom_call.1} parent=1 // pred_fallthru
      _
    %383 = vsyncpa [#allocation3], 1
    %384 = vsyncpa [#allocation6], 1
    %385 = vsyncpa [#allocation4], 1

</llo_original>
